<compile_context>
chip_gen: v7x
topology: tpu7x:2x2x1
jax: 0.10.0
libtpu: 0.0.40
codegen_flags: <defaults>
</compile_context>

<pallas_src>
import jax
import jax.numpy as jnp
from jax.experimental import pallas as pl
from jax.experimental.pallas import tpu as pltpu

NUM_FILTERS = 256
FC_HIDDEN = 256
NEG_SLOPE = 0.01          # PyTorch LeakyReLU default negative_slope
_MIB = 1024 * 1024


# --------------------------------------------------------------------------
# Kernel
# --------------------------------------------------------------------------
def _make_kernel(P, HW, rows, n_groups):
    L = P * HW

    def kernel(x_ref, wconv_ref, shift_ref, wfc_ref, bfc_ref, wout_ref,
               bout_ref, out_ref, s_ref):
        # x_ref:     (TB, C//P, P*HW) VMEM (lane-packed NCHW tile; f32 or bf16)
        # wconv_ref: (C//P, P*HW)     VMEM f32 (conv weight, BN scale folded, kron-expanded)
        # shift_ref: (1,)             SMEM f32 (conv bias + BN shift, folded)
        # wfc_ref:   (P*HW, 256)      VMEM bf16 (fc weight^T, zero rows >= HW)
        # bfc_ref:   (1, 256)         VMEM f32
        # wout_ref:  (256, 1)         VMEM bf16
        # bout_ref:  (1, 1)           VMEM f32
        # out_ref:   (TB, 1)          VMEM f32
        # s_ref:     (TB, P*HW)       VMEM f32 scratch (per-row conv partial sums)
        w = wconv_ref[...]                                   # (C//P, L), loop-invariant

        # ---- 1x1 conv: per-row MAC + sublane reduce; bounded vreg live set ----
        @pl.loop(0, n_groups)
        def _(g):
            base = g * rows
            for r in range(rows):                            # static unroll
                xb = x_ref[base + r].astype(jnp.float32)     # (C//P, L)
                s_ref[pl.ds(base + r, 1), :] = jnp.sum(
                    xb * w, axis=0, keepdims=True)           # (1, L)

        # ---- fold the P lane-packed halves (XLU rolls), BN shift, LeakyReLU ----
        s = s_ref[...]                                       # (TB, L) f32
        folded = s
        for k in range(1, P):
            folded = folded + pltpu.roll(s, shift=k * HW, axis=1)
        pre = folded + shift_ref[0]
        h = jnp.where(pre > 0, pre, NEG_SLOPE * pre).astype(jnp.bfloat16)

        # ---- fc: bf16 operands on the MXU, f32 accumulation ----
        y = jnp.dot(h, wfc_ref[...],
                    preferred_element_type=jnp.float32) + bfc_ref[...]
        y = jnp.where(y > 0, y, NEG_SLOPE * y).astype(jnp.bfloat16)

        # ---- fc_out + tanh ----
        z = jnp.dot(y, wout_ref[...],
                    preferred_element_type=jnp.float32) + bout_ref[...]
        out_ref[...] = jnp.tanh(z)                           # (TB, 1)

    return kernel


# --------------------------------------------------------------------------
# Host-side prep / tiling
# --------------------------------------------------------------------------
def _packing(C, HW):
    if HW < 128 and 128 % HW == 0 and C % (128 // HW) == 0:
        return 128 // HW
    return 1


def _tpu_vmem_and_kind():
    try:
        cap = int(getattr(pltpu.get_tpu_info(), "vmem_capacity_bytes", 0)) or 64 * _MIB
    except Exception:
        cap = 64 * _MIB
    try:
        kind = jax.devices()[0].device_kind.lower()
    except Exception:
        kind = ""
    return cap, kind


def _auto_tile(batch, row_bytes, tb_max=None):
    """Generation-aware batch tile: largest pow2 <= 256 whose double-buffered
    x tile stays within ~40% of physical VMEM; v5e capped at 128; on v7x nudge
    the grid-step count to be even so both TensorCores stay busy."""
    cap, kind = _tpu_vmem_and_kind()
    budget = int(0.4 * cap)
    limit = max(8, min(256, budget // (2 * row_bytes)))
    tb = 8
    while tb * 2 <= limit:
        tb *= 2
    if "v5" in kind:
        tb = min(tb, 128)
    if tb_max is not None:
        tb = min(tb, int(tb_max))
    if batch <= tb:
        return batch, cap
    if "v7" in kind:
        steps = -(-batch // tb)
        if steps > 1 and steps % 2 == 1:
            cand = ((-(-batch // (steps + 1)) + 7) // 8) * 8
            if cand >= 8 and (-(-batch // cand)) % 2 == 0:
                tb = cand
    return tb, cap


def prepare_params(params, H, W):
    """One-time folding / layout prep (outside the per-call forward path)."""
    C, HW = NUM_FILTERS, H * W
    P = _packing(C, HW)
    scale = params["bn_gamma"] / jnp.sqrt(params["bn_var"] + params["bn_eps"])      # (1,)
    w_scaled = (params["conv_w"].reshape(C) * scale[0]).astype(jnp.float32)         # (C,)
    wconv = jnp.repeat(w_scaled.reshape(C // P, P), HW, axis=1)                     # (C//P, P*HW)
    shift = (params["bn_beta"]
             + (params["conv_b"] - params["bn_mean"]) * scale).astype(jnp.float32)  # (1,)
    wfc_t = params["fc_w"].T.astype(jnp.bfloat16)                                   # (HW, 256)
    if P > 1:
        wfc_t = jnp.concatenate(
            [wfc_t, jnp.zeros(((P - 1) * HW, FC_HIDDEN), jnp.bfloat16)], axis=0)    # (P*HW, 256)
    return {
        "H": H, "W": W, "P": P,
        "wconv": wconv, "shift": shift, "wfc": wfc_t,
        "bfc": params["fc_b"].reshape(1, FC_HIDDEN).astype(jnp.float32),
        "wout": params["fc_out_w"].T.astype(jnp.bfloat16),                          # (256, 1)
        "bout": params["fc_out_b"].reshape(1, 1).astype(jnp.float32),
    }


def value_head_forward(x_nchw, prep, *, tb_max=None):
    """x_nchw: (B, 256, H, W) float32 or bfloat16 (PyTorch NCHW layout)."""
    B, C, H, W = x_nchw.shape
    assert C == NUM_FILTERS and H == prep["H"] and W == prep["W"]
    HW, P = H * W, prep["P"]
    Cp, L = C // P, P * HW

    # Free contiguous reshape: channel-group lane packing, NO transpose.
    x = x_nchw.reshape(B, Cp, L)

    row_bytes = Cp * L * x.dtype.itemsize
    tb, vmem_cap = _auto_tile(B, row_bytes, tb_max)
    rows = next(r for r in (8, 4, 2, 1) if tb % r == 0)
    kernel = _make_kernel(P, HW, rows, tb // rows)

    w_bytes = (prep["wconv"].nbytes + prep["wfc"].nbytes + prep["bfc"].nbytes
               + prep["wout"].nbytes + prep["bout"].nbytes)
    needed = 2 * tb * row_bytes + 2 * w_bytes + tb * L * 4 + 2 * tb * 4
    vmem_limit = int(min(vmem_cap - 2 * _MIB, max(needed + 8 * _MIB, 32 * _MIB)))

    flops = 2 * B * C * HW + 2 * B * L * FC_HIDDEN + 2 * B * FC_HIDDEN
    bytes_accessed = int(x.size * x.dtype.itemsize + w_bytes + B * 4)
    wfc_rows = prep["wfc"].shape[0]

    return pl.pallas_call(
        kernel,
        out_shape=jax.ShapeDtypeStruct((B, 1), jnp.float32),
        grid=(pl.cdiv(B, tb),),
        in_specs=[
            pl.BlockSpec((tb, Cp, L), lambda i: (i, 0, 0)),           # x: batch-tiled
            pl.BlockSpec((Cp, L), lambda i: (0, 0)),                  # conv weight (VMEM-resident)
            pl.BlockSpec(memory_space=pltpu.MemorySpace.SMEM),        # folded shift scalar
            pl.BlockSpec((wfc_rows, FC_HIDDEN), lambda i: (0, 0)),    # fc weight^T (bf16)
            pl.BlockSpec((1, FC_HIDDEN), lambda i: (0, 0)),           # fc bias
            pl.BlockSpec((FC_HIDDEN, 1), lambda i: (0, 0)),           # fc_out weight^T (bf16)
            pl.BlockSpec((1, 1), lambda i: (0, 0)),                   # fc_out bias
        ],
        out_specs=pl.BlockSpec((tb, 1), lambda i: (i, 0)),
        scratch_shapes=[pltpu.VMEM((tb, L), jnp.float32)],
        compiler_params=pltpu.CompilerParams(
            dimension_semantics=("parallel",),
            vmem_limit_bytes=vmem_limit),
        cost_estimate=pl.CostEstimate(
            flops=flops, transcendentals=B, bytes_accessed=bytes_accessed),
    )(x, prep["wconv"], prep["shift"], prep["wfc"], prep["bfc"],
      prep["wout"], prep["bout"])


# --------------------------------------------------------------------------
# Pure-JAX reference (mirrors the PyTorch module, eval-mode BN, f32 weights)
# --------------------------------------------------------------------------
def reference_forward(x_nchw, params):
    B, C, H, W = x_nchw.shape
    x = x_nchw.astype(jnp.float32)
    conv = jnp.einsum("bchw,c->bhw", x, params["conv_w"].reshape(C)) + params["conv_b"][0]
    bn = ((conv - params["bn_mean"][0])
          / jnp.sqrt(params["bn_var"][0] + params["bn_eps"])
          * params["bn_gamma"][0] + params["bn_beta"][0])
    h = jnp.where(bn > 0, bn, NEG_SLOPE * bn).reshape(B, -1)
    y = h @ params["fc_w"].T + params["fc_b"]
    y = jnp.where(y > 0, y, NEG_SLOPE * y)
    z = y @ params["fc_out_w"].T + params["fc_out_b"]
    return jnp.tanh(z)


def init_params(key, hw):
    ks = jax.random.split(key, 6)
    return {
        "conv_w": jax.random.normal(ks[0], (1, NUM_FILTERS, 1, 1), jnp.float32) * 0.05,
        "conv_b": jax.random.normal(ks[1], (1,), jnp.float32) * 0.05,
        "bn_gamma": jnp.full((1,), 1.1, jnp.float32),
        "bn_beta": jnp.full((1,), 0.05, jnp.float32),
        "bn_mean": jnp.full((1,), 0.10, jnp.float32),
        "bn_var": jnp.full((1,), 1.50, jnp.float32),
        "bn_eps": 1e-5,
        "fc_w": jax.random.normal(ks[2], (FC_HIDDEN, hw), jnp.float32) * 0.05,
        "fc_b": jax.random.normal(ks[3], (FC_HIDDEN,), jnp.float32) * 0.05,
        "fc_out_w": jax.random.normal(ks[4], (1, FC_HIDDEN), jnp.float32) * 0.05,
        "fc_out_b": jax.random.normal(ks[5], (1,), jnp.float32) * 0.05,
    }


if __name__ == "__main__":
    B, C, H, W = 2, NUM_FILTERS, 8, 8            # input_shape = (B, 256, 8, 8)
    key = jax.random.PRNGKey(0)
    kx, kp, kx2, kx3 = jax.random.split(key, 4)
    params = init_params(kp, H * W)
    prep = prepare_params(params, H, W)          # one-time weight prep

    # --- small f32 run (single block) ---
    x = jax.random.normal(kx, (B, C, H, W), jnp.float32)
    out = jax.block_until_ready(value_head_forward(x, prep))
    ref = reference_forward(x, params)
    assert out.shape == (B, 1), out.shape
    assert jnp.allclose(out, ref, atol=2.5e-2, rtol=2.5e-2), (out, ref)

    # --- bf16 activations (halved HBM traffic path) ---
    x_bf16 = x.astype(jnp.bfloat16)
    out_bf = jax.block_until_ready(value_head_forward(x_bf16, prep))
    ref_bf = reference_forward(x_bf16.astype(jnp.float32), params)
    assert jnp.allclose(out_bf, ref_bf, atol=3e-2, rtol=3e-2), (out_bf, ref_bf)

    # --- larger batch forcing a multi-step pipelined grid ---
    B2 = 192
    x2 = jax.random.normal(kx2, (B2, C, H, W), jnp.float32)
    out2 = jax.block_until_ready(value_head_forward(x2, prep, tb_max=64))
    ref2 = reference_forward(x2, params)
    assert out2.shape == (B2, 1), out2.shape
    assert jnp.allclose(out2, ref2, atol=2.5e-2, rtol=2.5e-2)

    # --- ragged batch (B not a multiple of the tile): clipped last block ---
    B3 = 20
    x3 = jax.random.normal(kx3, (B3, C, H, W), jnp.float32)
    out3 = jax.block_until_ready(value_head_forward(x3, prep, tb_max=8))
    ref3 = reference_forward(x3, params)
    assert jnp.allclose(out3, ref3, atol=2.5e-2, rtol=2.5e-2)

    print("KERNEL_OK")
</pallas_src>

<mosaic_0001>
module attributes {stable_mosaic.version = 11 : i64} {
  func.func @kernel(%arg0: i32, %arg1: memref<2x128x128xf32, #tpu.memory_space<vmem>>, %arg2: memref<128x128xf32, #tpu.memory_space<vmem>>, %arg3: memref<1xf32, #tpu.memory_space<smem>>, %arg4: memref<128x256xbf16, #tpu.memory_space<vmem>>, %arg5: memref<1x256xf32, #tpu.memory_space<vmem>>, %arg6: memref<256x1xbf16, #tpu.memory_space<vmem>>, %arg7: memref<1x1xf32, #tpu.memory_space<vmem>>, %arg8: memref<2x1xf32, #tpu.memory_space<vmem>>, %arg9: memref<2x128xf32, #tpu.memory_space<vmem>>) attributes {dimension_semantics = [#tpu.dimension_semantics<parallel>], iteration_bounds = array<i64: 1>, scalar_prefetch = 0 : i64, scratch_operands = 1 : i64, tpu.core_type = #tpu.core_type<tc>, window_params = [{transform_indices = @transform_0, window_bounds = array<i64: 2, 128, 128>}, {pipeline_mode = #tpu.pipeline_mode<synchronous>, transform_indices = @transform_1, window_bounds = array<i64: 128, 128>}, {transform_indices = @transform_2, window_bounds = array<i64: 1>}, {pipeline_mode = #tpu.pipeline_mode<synchronous>, transform_indices = @transform_3, window_bounds = array<i64: 128, 256>}, {pipeline_mode = #tpu.pipeline_mode<synchronous>, transform_indices = @transform_4, window_bounds = array<i64: 1, 256>}, {pipeline_mode = #tpu.pipeline_mode<synchronous>, transform_indices = @transform_5, window_bounds = array<i64: 256, 1>}, {pipeline_mode = #tpu.pipeline_mode<synchronous>, transform_indices = @transform_6, window_bounds = array<i64: 1, 1>}, {transform_indices = @transform_7, window_bounds = array<i64: 2, 1>}]} {
    %c0 = arith.constant 0 : index
    %c0_0 = arith.constant 0 : index
    %0 = vector.load %arg2[%c0, %c0_0] : memref<128x128xf32, #tpu.memory_space<vmem>>, vector<128x128xf32>
    %c0_i32 = arith.constant 0 : i32
    %c1_i32 = arith.constant 1 : i32
    %1 = arith.muli %c0_i32, %c1_i32 : i32
    %c0_i32_1 = arith.constant 0 : i32
    %2 = arith.addi %c0_i32_1, %1 : i32
    %c2_i32 = arith.constant 2 : i32
    %3 = arith.muli %2, %c2_i32 : i32
    %c0_i32_2 = arith.constant 0 : i32
    %4 = arith.addi %3, %c0_i32_2 : i32
    %5 = arith.index_cast %4 : i32 to index
    %c0_3 = arith.constant 0 : index
    %c0_4 = arith.constant 0 : index
    %6 = vector.load %arg1[%5, %c0_3, %c0_4] : memref<2x128x128xf32, #tpu.memory_space<vmem>>, vector<1x128x128xf32>
    %7 = vector.shape_cast %6 : vector<1x128x128xf32> to vector<128x128xf32>
    %8 = arith.mulf %7, %0 : vector<128x128xf32>
    %cst = arith.constant dense<0.000000e+00> : vector<128xf32>
    %9 = vector.multi_reduction <add>, %8, %cst [0] : vector<128x128xf32> to vector<128xf32>
    %10 = vector.shape_cast %9 : vector<128xf32> to vector<1x128xf32>
    %c0_i32_5 = arith.constant 0 : i32
    %11 = arith.addi %3, %c0_i32_5 : i32
    %12 = arith.index_cast %11 : i32 to index
    %c0_6 = arith.constant 0 : index
    %13 = vector.load %arg9[%12, %c0_6] : memref<2x128xf32, #tpu.memory_space<vmem>>, vector<1x128xf32>
    tpu.vector_store %arg9[%12, %c0_6], %10 {strides = array<i32>} : memref<2x128xf32, #tpu.memory_space<vmem>>, vector<1x128xf32>,
    %c1_i32_7 = arith.constant 1 : i32
    %14 = arith.addi %3, %c1_i32_7 : i32
    %15 = arith.index_cast %14 : i32 to index
    %c0_8 = arith.constant 0 : index
    %c0_9 = arith.constant 0 : index
    %16 = vector.load %arg1[%15, %c0_8, %c0_9] : memref<2x128x128xf32, #tpu.memory_space<vmem>>, vector<1x128x128xf32>
    %17 = vector.shape_cast %16 : vector<1x128x128xf32> to vector<128x128xf32>
    %18 = arith.mulf %17, %0 : vector<128x128xf32>
    %cst_10 = arith.constant dense<0.000000e+00> : vector<128xf32>
    %19 = vector.multi_reduction <add>, %18, %cst_10 [0] : vector<128x128xf32> to vector<128xf32>
    %20 = vector.shape_cast %19 : vector<128xf32> to vector<1x128xf32>
    %c1_i32_11 = arith.constant 1 : i32
    %21 = arith.addi %3, %c1_i32_11 : i32
    %22 = arith.index_cast %21 : i32 to index
    %c0_12 = arith.constant 0 : index
    %23 = vector.load %arg9[%22, %c0_12] : memref<2x128xf32, #tpu.memory_space<vmem>>, vector<1x128xf32>
    tpu.vector_store %arg9[%22, %c0_12], %20 {strides = array<i32>} : memref<2x128xf32, #tpu.memory_space<vmem>>, vector<1x128xf32>,
    %c1_i32_13 = arith.constant 1 : i32
    %c0_14 = arith.constant 0 : index
    %c0_15 = arith.constant 0 : index
    %24 = vector.load %arg9[%c0_14, %c0_15] : memref<2x128xf32, #tpu.memory_space<vmem>>, vector<2x128xf32>
    %c64_i32 = arith.constant 64 : i32
    %25 = tpu.dynamic_rotate %24 by %c64_i32 dim 1 : vector<2x128xf32>, i32 -> vector<2x128xf32>
    %26 = arith.addf %24, %25 : vector<2x128xf32>
    %c0_16 = arith.constant 0 : index
    %27 = memref.load %arg3[%c0_16] : memref<1xf32, #tpu.memory_space<smem>>
    %28 = vector.broadcast %27 : f32 to vector<2x128xf32>
    %29 = arith.addf %26, %28 : vector<2x128xf32>
    %cst_17 = arith.constant 0.000000e+00 : f32
    %30 = vector.broadcast %cst_17 : f32 to vector<2x128xf32>
    %31 = arith.cmpf ogt, %29, %30 : vector<2x128xf32>
    %cst_18 = arith.constant 0.00999999977 : f32
    %32 = vector.broadcast %cst_18 : f32 to vector<2x128xf32>
    %33 = arith.mulf %32, %29 : vector<2x128xf32>
    %34 = arith.select %31, %29, %33 : vector<2x128xi1>, vector<2x128xf32>
    %35 = arith.truncf %34 : vector<2x128xf32> to vector<2x128xbf16>
    %c0_19 = arith.constant 0 : index
    %c0_20 = arith.constant 0 : index
    %36 = vector.load %arg4[%c0_19, %c0_20] : memref<128x256xbf16, #tpu.memory_space<vmem>>, vector<128x256xbf16>
    %cst_21 = arith.constant dense<0.000000e+00> : vector<2x256xf32>
    %37 = tpu.matmul %35, %36, %cst_21 {dimension_numbers = #tpu.dot_dimension_numbers<[1], [0], [0], [1], [0, 0, 1, 1], [], []>} : vector<2x128xbf16>, vector<128x256xbf16>, vector<2x256xf32> -> vector<2x256xf32>
    %c0_22 = arith.constant 0 : index
    %c0_23 = arith.constant 0 : index
    %38 = vector.load %arg5[%c0_22, %c0_23] : memref<1x256xf32, #tpu.memory_space<vmem>>, vector<1x256xf32>
    %39 = vector.broadcast %38 : vector<1x256xf32> to vector<2x256xf32>
    %40 = arith.addf %37, %39 : vector<2x256xf32>
    %cst_24 = arith.constant 0.000000e+00 : f32
    %41 = vector.broadcast %cst_24 : f32 to vector<2x256xf32>
    %42 = arith.cmpf ogt, %40, %41 : vector<2x256xf32>
    %cst_25 = arith.constant 0.00999999977 : f32
    %43 = vector.broadcast %cst_25 : f32 to vector<2x256xf32>
    %44 = arith.mulf %43, %40 : vector<2x256xf32>
    %45 = arith.select %42, %40, %44 : vector<2x256xi1>, vector<2x256xf32>
    %46 = arith.truncf %45 : vector<2x256xf32> to vector<2x256xbf16>
    %c0_26 = arith.constant 0 : index
    %c0_27 = arith.constant 0 : index
    %47 = vector.load %arg6[%c0_26, %c0_27] : memref<256x1xbf16, #tpu.memory_space<vmem>>, vector<256x1xbf16>
    %cst_28 = arith.constant dense<0.000000e+00> : vector<2x1xf32>
    %48 = tpu.matmul %46, %47, %cst_28 {dimension_numbers = #tpu.dot_dimension_numbers<[1], [0], [0], [1], [0, 0, 1, 1], [], []>} : vector<2x256xbf16>, vector<256x1xbf16>, vector<2x1xf32> -> vector<2x1xf32>
    %c0_29 = arith.constant 0 : index
    %c0_30 = arith.constant 0 : index
    %49 = vector.load %arg7[%c0_29, %c0_30] : memref<1x1xf32, #tpu.memory_space<vmem>>, vector<1x1xf32>
    %50 = vector.broadcast %49 : vector<1x1xf32> to vector<2x1xf32>
    %51 = arith.addf %48, %50 : vector<2x1xf32>
    %52 = math.tanh %51 : vector<2x1xf32>
    %c0_31 = arith.constant 0 : index
    %c0_32 = arith.constant 0 : index
    %53 = vector.load %arg8[%c0_31, %c0_32] : memref<2x1xf32, #tpu.memory_space<vmem>>, vector<2x1xf32>
    tpu.vector_store %arg8[%c0_31, %c0_32], %52 {strides = array<i32>} : memref<2x1xf32, #tpu.memory_space<vmem>>, vector<2x1xf32>,
    return
  }
  func.func @transform_0(%arg0: i32) -> (i32, i32, i32) {
    %c0_i32 = arith.constant 0 : i32
    %c0_i32_0 = arith.constant 0 : i32
    %c0_i32_1 = arith.constant 0 : i32
    return %arg0, %c0_i32, %c0_i32_0 : i32, i32, i32
  }
  func.func @transform_1(%arg0: i32) -> (i32, i32) {
    %c0_i32 = arith.constant 0 : i32
    %c0_i32_0 = arith.constant 0 : i32
    %c0_i32_1 = arith.constant 0 : i32
    return %c0_i32, %c0_i32_0 : i32, i32
  }
  func.func @transform_2(%arg0: i32) -> i32 {
    %c0_i32 = arith.constant 0 : i32
    %c0_i32_0 = arith.constant 0 : i32
    return %c0_i32 : i32
  }
  func.func @transform_3(%arg0: i32) -> (i32, i32) {
    %c0_i32 = arith.constant 0 : i32
    %c0_i32_0 = arith.constant 0 : i32
    %c0_i32_1 = arith.constant 0 : i32
    return %c0_i32, %c0_i32_0 : i32, i32
  }
  func.func @transform_4(%arg0: i32) -> (i32, i32) {
    %c0_i32 = arith.constant 0 : i32
    %c0_i32_0 = arith.constant 0 : i32
    %c0_i32_1 = arith.constant 0 : i32
    return %c0_i32, %c0_i32_0 : i32, i32
  }
  func.func @transform_5(%arg0: i32) -> (i32, i32) {
    %c0_i32 = arith.constant 0 : i32
    %c0_i32_0 = arith.constant 0 : i32
    %c0_i32_1 = arith.constant 0 : i32
    return %c0_i32, %c0_i32_0 : i32, i32
  }
  func.func @transform_6(%arg0: i32) -> (i32, i32) {
    %c0_i32 = arith.constant 0 : i32
    %c0_i32_0 = arith.constant 0 : i32
    %c0_i32_1 = arith.constant 0 : i32
    return %c0_i32, %c0_i32_0 : i32, i32
  }
  func.func @transform_7(%arg0: i32) -> (i32, i32) {
    %c0_i32 = arith.constant 0 : i32
    %c0_i32_0 = arith.constant 0 : i32
    return %arg0, %c0_i32 : i32, i32
  }
}

</mosaic_0001>

<llo_original>
// kernel: tpu_custom_call.1
$region0: #{tpu_custom_call.1}
  #allocation0 [shape = 'u32[]', space=smem, size = 0x4, offset = 0x4, fixed_abs, tag = 'smem constant byte address 0x4 - core index']
  #allocation1 [shape = 'u32[144,128]{1,0:T(1,128)}', space=vmem, size = 0x12000, scoped, tag = 'internal scratch']
  #allocation2 [shape = 'f32[2,128]{1,0:T(2,128)}', space=vmem, size = 0x400, scoped, tag = 'scratch operand']
  #allocation3 [shape = 'f32[1]{0:T(128)S(6)}', space=smem, size = 0x200, scoped, tag = 'scoped memory for tpu_custom_call.1']
  #allocation4 [shape = 'f32[1,1]{1,0:T(1,128)S(1)}', space=vmem, size = 0x200, scoped, tag = 'scoped memory for tpu_custom_call.1']
  %s0 = inlined_call_operand.hbm [shape: f32[2,128,128], index: 0, kind: input, shape index: {}]
  %s1 = inlined_call_operand.vmem [shape: f32[128,128], index: 1, kind: input, shape index: {}]
  %s2 = inlined_call_operand.<no memory space> [shape: f32[1], index: 2, kind: input, shape index: {}]
  %s3 = inlined_call_operand.hbm [shape: bf16[128,256], index: 3, kind: input, shape index: {}]
  %s4 = inlined_call_operand.vmem [shape: f32[1,256], index: 4, kind: input, shape index: {}]
  %s5 = inlined_call_operand.vmem [shape: bf16[256,1], index: 5, kind: input, shape index: {}]
  %s6 = inlined_call_operand.<no memory space> [shape: f32[1,1], index: 6, kind: input, shape index: {}]
  %s7 = inlined_call_operand.vmem [shape: f32[2,1], index: 7, kind: output, shape index: {}]
  %s8 = sld [smem:[#allocation0]]
  $region46: #{tpu_custom_call.1} parent=0
    _
  %s10 = ssub.s32 1, %s8
  %s11 = scalar_select 0, %s10, %s8
  %12 = sst [smem:[#allocation3]] %s2
  %v13 = vstv %s6
  %14 = vst [vmem:[#allocation4] sm:$0x1] %v13
  $region1: #{tpu_custom_call.1} parent=0
    #allocation5 [shape = 'u8[131072]{0}', space=vmem, size = 0x20000, scoped, tag = 'input window, operand 0, single buffered']
    #allocation6 [shape = 's32[1]{0}', space=sflag, size = 0x4, scoped, tag = 'scoped memory for tpu_custom_call.1']
    #allocation7 [shape = 'u8[65536]{0}', space=vmem, size = 0x10000, scoped, tag = 'input window, operand 3, single buffered']
    #allocation8 [shape = 's32[1]{0}', space=sflag, size = 0x4, scoped, tag = 'scoped memory for tpu_custom_call.1']
    %15 = vsyncpa [#allocation6], 0
    %16 = vsyncpa [#allocation8], 0
    // Predicated region
    $region2: #{tpu_custom_call.1} parent=1 // pred_check
      _
    $region3: #{tpu_custom_call.1} parent=1 // pred_check_branch
      %18 = sbr.rel (0) target = $region5
    $region4: #{tpu_custom_call.1} parent=1 // pred_region
      %s20 = ssub.s32 4096, 4096
      %21 = vsyncadd [#allocation6], %s20
      %s22 = sshll.u32 [#allocation5], 4
      %s23 = int_to_ptr.vmem [resolvable:$true] %s22
      %28 = dma.hbm_to_vmem [thread:$0]  %s0, 4096, %s23, [#allocation6], 128, 128, 8
    $region5: #{tpu_custom_call.1} parent=1 // pred_fallthru
      _
    // Predicated region
    $region6: #{tpu_custom_call.1} parent=1 // pred_check
      _
    $region7: #{tpu_custom_call.1} parent=1 // pred_check_branch
      %30 = sbr.rel (0) target = $region9
    $region8: #{tpu_custom_call.1} parent=1 // pred_region
      _
    $region9: #{tpu_custom_call.1} parent=1 // pred_fallthru
      _
    // Predicated region
    $region10: #{tpu_custom_call.1} parent=1 // pred_check
      _
    $region11: #{tpu_custom_call.1} parent=1 // pred_check_branch
      %32 = sbr.rel (0) target = $region13
    $region12: #{tpu_custom_call.1} parent=1 // pred_region
      _
    $region13: #{tpu_custom_call.1} parent=1 // pred_fallthru
      _
    // Predicated region
    $region14: #{tpu_custom_call.1} parent=1 // pred_check
      _
    $region15: #{tpu_custom_call.1} parent=1 // pred_check_branch
      %34 = sbr.rel (0) target = $region17
    $region16: #{tpu_custom_call.1} parent=1 // pred_region
      %s36 = ssub.s32 2048, 2048
      %37 = vsyncadd [#allocation8], %s36
      %s38 = sshll.u32 [#allocation7], 4
      %s39 = int_to_ptr.vmem [resolvable:$true] %s38
      %44 = dma.hbm_to_vmem [thread:$0]  %s3, 2048, %s39, [#allocation8], 128, 128, 8
    $region17: #{tpu_custom_call.1} parent=1 // pred_fallthru
      _
    // Predicated region
    $region18: #{tpu_custom_call.1} parent=1 // pred_check
      _
    $region19: #{tpu_custom_call.1} parent=1 // pred_check_branch
      %46 = sbr.rel (0) target = $region21
    $region20: #{tpu_custom_call.1} parent=1 // pred_region
      _
    $region21: #{tpu_custom_call.1} parent=1 // pred_fallthru
      _
    // Predicated region
    $region22: #{tpu_custom_call.1} parent=1 // pred_check
      _
    $region23: #{tpu_custom_call.1} parent=1 // pred_check_branch
      %48 = sbr.rel (0) target = $region25
    $region24: #{tpu_custom_call.1} parent=1 // pred_region
      _
    $region25: #{tpu_custom_call.1} parent=1 // pred_fallthru
      _
    // Predicated region
    $region26: #{tpu_custom_call.1} parent=1 // pred_check
      _
    $region27: #{tpu_custom_call.1} parent=1 // pred_check_branch
      %50 = sbr.rel (0) target = $region29
    $region28: #{tpu_custom_call.1} parent=1 // pred_region
      _
    $region29: #{tpu_custom_call.1} parent=1 // pred_fallthru
      _
    // Predicated region
    $region30: #{tpu_custom_call.1} parent=1 // pred_check
      _
    $region31: #{tpu_custom_call.1} parent=1 // pred_check_branch
      %52 = sbr.rel (0) target = $region33
    $region32: #{tpu_custom_call.1} parent=1 // pred_region
      %53 = dma.done [#allocation6], 4096
    $region33: #{tpu_custom_call.1} parent=1 // pred_fallthru
      _
    // Predicated region
    $region34: #{tpu_custom_call.1} parent=1 // pred_check
      _
    $region35: #{tpu_custom_call.1} parent=1 // pred_check_branch
      %55 = sbr.rel (0) target = $region37
    $region36: #{tpu_custom_call.1} parent=1 // pred_region
      %56 = dma.done [#allocation8], 2048
    $region37: #{tpu_custom_call.1} parent=1 // pred_fallthru
      _
    %v58 = vld [vmem:[%s1] sm:$0xff]
    %v59 = vld [vmem:[%s1 + $0x8] sm:$0xff]
    %v60 = vld [vmem:[%s1 + $0x10] sm:$0xff]
    %v61 = vld [vmem:[%s1 + $0x18] sm:$0xff]
    %v62 = vld [vmem:[%s1 + $0x20] sm:$0xff]
    %v63 = vld [vmem:[%s1 + $0x28] sm:$0xff]
    %v64 = vld [vmem:[%s1 + $0x30] sm:$0xff]
    %v65 = vld [vmem:[%s1 + $0x38] sm:$0xff]
    %v66 = vld [vmem:[%s1 + $0x40] sm:$0xff]
    %v67 = vld [vmem:[%s1 + $0x48] sm:$0xff]
    %v68 = vld [vmem:[%s1 + $0x50] sm:$0xff]
    %v69 = vld [vmem:[%s1 + $0x58] sm:$0xff]
    %v70 = vld [vmem:[%s1 + $0x60] sm:$0xff]
    %v71 = vld [vmem:[%s1 + $0x68] sm:$0xff]
    %v72 = vld [vmem:[%s1 + $0x70] sm:$0xff]
    %v73 = vld [vmem:[%s1 + $0x78] sm:$0xff]
    %v74 = vld [vmem:[#allocation5] sm:$0xff]
    %v75 = vld [vmem:[#allocation5 + $0x8] sm:$0xff]
    %v76 = vld [vmem:[#allocation5 + $0x10] sm:$0xff]
    %v77 = vld [vmem:[#allocation5 + $0x18] sm:$0xff]
    %v78 = vld [vmem:[#allocation5 + $0x20] sm:$0xff]
    %v79 = vld [vmem:[#allocation5 + $0x28] sm:$0xff]
    %v80 = vld [vmem:[#allocation5 + $0x30] sm:$0xff]
    %v81 = vld [vmem:[#allocation5 + $0x38] sm:$0xff]
    %v82 = vld [vmem:[#allocation5 + $0x40] sm:$0xff]
    %v83 = vld [vmem:[#allocation5 + $0x48] sm:$0xff]
    %v84 = vld [vmem:[#allocation5 + $0x50] sm:$0xff]
    %v85 = vld [vmem:[#allocation5 + $0x58] sm:$0xff]
    %v86 = vld [vmem:[#allocation5 + $0x60] sm:$0xff]
    %v87 = vld [vmem:[#allocation5 + $0x68] sm:$0xff]
    %v88 = vld [vmem:[#allocation5 + $0x70] sm:$0xff]
    %v89 = vld [vmem:[#allocation5 + $0x78] sm:$0xff]
    %v90 = vmul.f32 %v74, %v58
    %v91 = vmul.f32 %v75, %v59
    %v92 = vmul.f32 %v76, %v60
    %v93 = vmul.f32 %v77, %v61
    %v94 = vmul.f32 %v78, %v62
    %v95 = vmul.f32 %v79, %v63
    %v96 = vmul.f32 %v80, %v64
    %v97 = vmul.f32 %v81, %v65
    %v98 = vmul.f32 %v82, %v66
    %v99 = vmul.f32 %v83, %v67
    %v100 = vmul.f32 %v84, %v68
    %v101 = vmul.f32 %v85, %v69
    %v102 = vmul.f32 %v86, %v70
    %v103 = vmul.f32 %v87, %v71
    %v104 = vmul.f32 %v88, %v72
    %v105 = vmul.f32 %v89, %v73
    %v106 = vadd.f32 %v90, %v91
    %v107 = vadd.f32 %v106, %v92
    %v108 = vadd.f32 %v107, %v93
    %v109 = vadd.f32 %v108, %v94
    %v110 = vadd.f32 %v109, %v95
    %v111 = vadd.f32 %v110, %v96
    %v112 = vadd.f32 %v111, %v97
    %v113 = vadd.f32 %v112, %v98
    %v114 = vadd.f32 %v113, %v99
    %v115 = vadd.f32 %v114, %v100
    %v116 = vadd.f32 %v115, %v101
    %v117 = vadd.f32 %v116, %v102
    %v118 = vadd.f32 %v117, %v103
    %v119 = vadd.f32 %v118, %v104
    %v120 = vadd.f32 %v119, %v105
    %v121 = vrot.slane %v120, 4
    %v122 = vadd.f32 %v120, %v121
    %v123 = vrot.slane %v122, 2
    %v124 = vadd.f32 %v122, %v123
    %v125 = vrot.slane %v124, 1
    %v126 = vadd.f32 %v124, %v125
    %127 = vst [vmem:[#allocation2] sm:$0x1] %v126
    %s128 = scalar_lea.vmem [#allocation5], 128
    %v129 = vld [vmem:[%s128] sm:$0xff]
    %v130 = vld [vmem:[%s128 + $0x8] sm:$0xff]
    %v131 = vld [vmem:[%s128 + $0x10] sm:$0xff]
    %v132 = vld [vmem:[%s128 + $0x18] sm:$0xff]
    %v133 = vld [vmem:[%s128 + $0x20] sm:$0xff]
    %v134 = vld [vmem:[%s128 + $0x28] sm:$0xff]
    %v135 = vld [vmem:[%s128 + $0x30] sm:$0xff]
    %v136 = vld [vmem:[%s128 + $0x38] sm:$0xff]
    %v137 = vld [vmem:[%s128 + $0x40] sm:$0xff]
    %v138 = vld [vmem:[%s128 + $0x48] sm:$0xff]
    %v139 = vld [vmem:[%s128 + $0x50] sm:$0xff]
    %v140 = vld [vmem:[%s128 + $0x58] sm:$0xff]
    %v141 = vld [vmem:[%s128 + $0x60] sm:$0xff]
    %v142 = vld [vmem:[%s128 + $0x68] sm:$0xff]
    %v143 = vld [vmem:[%s128 + $0x70] sm:$0xff]
    %v144 = vld [vmem:[%s128 + $0x78] sm:$0xff]
    %v145 = vmul.f32 %v129, %v58
    %v146 = vmul.f32 %v130, %v59
    %v147 = vmul.f32 %v131, %v60
    %v148 = vmul.f32 %v132, %v61
    %v149 = vmul.f32 %v133, %v62
    %v150 = vmul.f32 %v134, %v63
    %v151 = vmul.f32 %v135, %v64
    %v152 = vmul.f32 %v136, %v65
    %v153 = vmul.f32 %v137, %v66
    %v154 = vmul.f32 %v138, %v67
    %v155 = vmul.f32 %v139, %v68
    %v156 = vmul.f32 %v140, %v69
    %v157 = vmul.f32 %v141, %v70
    %v158 = vmul.f32 %v142, %v71
    %v159 = vmul.f32 %v143, %v72
    %v160 = vmul.f32 %v144, %v73
    %v161 = vadd.f32 %v145, %v146
    %v162 = vadd.f32 %v161, %v147
    %v163 = vadd.f32 %v162, %v148
    %v164 = vadd.f32 %v163, %v149
    %v165 = vadd.f32 %v164, %v150
    %v166 = vadd.f32 %v165, %v151
    %v167 = vadd.f32 %v166, %v152
    %v168 = vadd.f32 %v167, %v153
    %v169 = vadd.f32 %v168, %v154
    %v170 = vadd.f32 %v169, %v155
    %v171 = vadd.f32 %v170, %v156
    %v172 = vadd.f32 %v171, %v157
    %v173 = vadd.f32 %v172, %v158
    %v174 = vadd.f32 %v173, %v159
    %v175 = vadd.f32 %v174, %v160
    %v176 = vrot.slane %v175, 4
    %v177 = vadd.f32 %v175, %v176
    %v178 = vrot.slane %v177, 2
    %v179 = vadd.f32 %v177, %v178
    %v180 = vrot.slane %v179, 1
    %v181 = vadd.f32 %v179, %v180
    %182 = vst [vmem:[#allocation2 + $0x1] sm:$0x1] %v181
    %v183 = vld [vmem:[#allocation2] sm:$0x3]
    %184 = vrot.lane.b32.xlu0 %v183, 64
    %v185 = vpop.permute.xlu0 %184
    %v186 = vadd.f32 %v183, %v185
    %s187 = sld [smem:[#allocation3]]
    %v188 = vstv %s187
    %v189 = vadd.f32 %v186, %v188
    %vm190 = vcmp.gt.f32.partialorder %v189, 0.0
    %v191 = vmul.f32 %v189, 0.01
    %v192 = vsel %vm190, %v189, %v191
    %v193 = vpack.c.bf16 %v192, %v192
    %v194 = vld [vmem:[#allocation7] sm:$0xff]
    %v195 = vld [vmem:[#allocation7 + $0x8] sm:$0xff]
    %v196 = vld [vmem:[#allocation7 + $0x10] sm:$0xff]
    %v197 = vld [vmem:[#allocation7 + $0x18] sm:$0xff]
    %v198 = vld [vmem:[#allocation7 + $0x20] sm:$0xff]
    %v199 = vld [vmem:[#allocation7 + $0x28] sm:$0xff]
    %v200 = vld [vmem:[#allocation7 + $0x30] sm:$0xff]
    %v201 = vld [vmem:[#allocation7 + $0x38] sm:$0xff]
    %v202 = vld [vmem:[#allocation7 + $0x40] sm:$0xff]
    %v203 = vld [vmem:[#allocation7 + $0x48] sm:$0xff]
    %v204 = vld [vmem:[#allocation7 + $0x50] sm:$0xff]
    %v205 = vld [vmem:[#allocation7 + $0x58] sm:$0xff]
    %v206 = vld [vmem:[#allocation7 + $0x60] sm:$0xff]
    %v207 = vld [vmem:[#allocation7 + $0x68] sm:$0xff]
    %v208 = vld [vmem:[#allocation7 + $0x70] sm:$0xff]
    %v209 = vld [vmem:[#allocation7 + $0x78] sm:$0xff]
    %v210 = vld [vmem:[%s4] sm:$0x3]
    %v212 = vlaneseq
    %v213 = vshrl.u32 %v212, 7
    %v214 = vsub.s32 0, %v213
    %v215 = vrot.slane %v210, %v214
    %v216 = vlaneseq
    %v217 = vshrl.u32 %v216, 7
    %v218 = vsub.s32 1, %v217
    %v219 = vrot.slane %v210, %v218
    %v238 = vunpack.c.l.b16 %v194
    %v239 = vunpack.c.h.b16 %v194
    %v240 = vunpack.c.l.b16 %v195
    %v241 = vunpack.c.h.b16 %v195
    %v242 = vunpack.c.l.b16 %v196
    %v243 = vunpack.c.h.b16 %v196
    %v244 = vunpack.c.l.b16 %v197
    %v245 = vunpack.c.h.b16 %v197
    %v246 = vunpack.c.l.b16 %v198
    %v247 = vunpack.c.h.b16 %v198
    %v248 = vunpack.c.l.b16 %v199
    %v249 = vunpack.c.h.b16 %v199
    %v250 = vunpack.c.l.b16 %v200
    %v251 = vunpack.c.h.b16 %v200
    %v252 = vunpack.c.l.b16 %v201
    %v253 = vunpack.c.h.b16 %v201
    %v254 = vunpack.c.l.b16 %v202
    %v255 = vunpack.c.h.b16 %v202
    %v256 = vunpack.c.l.b16 %v203
    %v257 = vunpack.c.h.b16 %v203
    %v258 = vunpack.c.l.b16 %v204
    %v259 = vunpack.c.h.b16 %v204
    %v260 = vunpack.c.l.b16 %v205
    %v261 = vunpack.c.h.b16 %v205
    %v262 = vunpack.c.l.b16 %v206
    %v263 = vunpack.c.h.b16 %v206
    %v264 = vunpack.c.l.b16 %v207
    %v265 = vunpack.c.h.b16 %v207
    %v266 = vunpack.c.l.b16 %v208
    %v267 = vunpack.c.h.b16 %v208
    %v268 = vunpack.c.l.b16 %v209
    %v269 = vunpack.c.h.b16 %v209
    %v270 = vpack.c.b16 %v240, %v238
    %v271 = vpack.c.b16 %v241, %v239
    %v272 = vpack.c.b16 %v244, %v242
    %v273 = vpack.c.b16 %v245, %v243
    %v274 = vpack.c.b16 %v248, %v246
    %v275 = vpack.c.b16 %v249, %v247
    %v276 = vpack.c.b16 %v252, %v250
    %v277 = vpack.c.b16 %v253, %v251
    %v278 = vpack.c.b16 %v256, %v254
    %v279 = vpack.c.b16 %v257, %v255
    %v280 = vpack.c.b16 %v260, %v258
    %v281 = vpack.c.b16 %v261, %v259
    %v282 = vpack.c.b16 %v264, %v262
    %v283 = vpack.c.b16 %v265, %v263
    %v284 = vpack.c.b16 %v268, %v266
    %v285 = vpack.c.b16 %v269, %v267
    %302 = vmatprep.subr.bf16.mxu0 %v271
    %303 = vmatpush1.bf16.msra.mxu0 %v270
    %304 = vmatprep.subr.bf16.mxu0 %v273
    %305 = vmatpush1.bf16.msra.mxu0 %v272
    %306 = vmatprep.subr.bf16.mxu0 %v275
    %307 = vmatpush1.bf16.msra.mxu0 %v274
    %308 = vmatprep.subr.bf16.mxu0 %v277
    %309 = vmatpush1.bf16.msra.mxu0 %v276
    %310 = vmatprep.subr.bf16.mxu0 %v279
    %311 = vmatpush1.bf16.msra.mxu0 %v278
    %312 = vmatprep.subr.bf16.mxu0 %v281
    %313 = vmatpush1.bf16.msra.mxu0 %v280
    %314 = vmatprep.subr.bf16.mxu0 %v283
    %315 = vmatpush1.bf16.msra.mxu0 %v282
    %316 = vmatprep.subr.bf16.mxu0 %v285
    %317 = vmatpush1.bf16.msra.mxu0 %v284
    %318 = vmatprep.subr.bf16.mxu0 0
    %319 = vmatpush1.bf16.msra.mxu0 0
    %320 = vmatprep.subr.bf16.mxu0 0
    %321 = vmatpush1.bf16.msra.mxu0 0
    %322 = vmatprep.subr.bf16.mxu0 0
    %323 = vmatpush1.bf16.msra.mxu0 0
    %324 = vmatprep.subr.bf16.mxu0 0
    %325 = vmatpush1.bf16.msra.mxu0 0
    %326 = vmatprep.subr.bf16.mxu0 0
    %327 = vmatpush1.bf16.msra.mxu0 0
    %328 = vmatprep.subr.bf16.mxu0 0
    %329 = vmatpush1.bf16.msra.mxu0 0
    %330 = vmatprep.subr.bf16.mxu0 0
    %331 = vmatpush1.bf16.msra.mxu0 0
    %332 = vmatprep.subr.bf16.mxu0 0
    %333 = vmatpush1.bf16.msra.mxu0 0
    %334 = vmatprep.mubr.bf16.mxu0 0
    %335 = vmatmul.mubr.bf16.gmra.mrb[0].mxu0 %v193
    %v336 = vpop.f32.mrb[0].mxu0
    %v337 = vadd.f32 %v215, %v336
    %v338 = vpop.f32.mrb[0].mxu0
    %v339 = vadd.f32 %v219, %v338
    %v340 = vpop.f32.mrb[0].mxu0
    %v341 = vpop.f32.mrb[0].mxu0
    %342 = vdwg.mxu0
    %vm343 = vcmp.gt.f32.partialorder %v337, 0.0
    %vm344 = vcmp.gt.f32.partialorder %v339, 0.0
    %v345 = vmul.f32 %v337, 0.01
    %v346 = vmul.f32 %v339, 0.01
    %v347 = vsel %vm343, %v337, %v345
    %v348 = vsel %vm344, %v339, %v346
    %v349 = vpack.c.bf16 %v347, %v347
    %v350 = vpack.c.bf16 %v348, %v348
    %v351 = vld [vmem:[%s5] sm:$0xf]
    %v352 = vld [vmem:[%s5 + $0x4] sm:$0xf]
    %v353 = vld [vmem:[%s5 + $0x8] sm:$0xf]
    %v354 = vld [vmem:[%s5 + $0xc] sm:$0xf]
    %v355 = vld [vmem:[%s5 + $0x10] sm:$0xf]
    %v356 = vld [vmem:[%s5 + $0x14] sm:$0xf]
    %v357 = vld [vmem:[%s5 + $0x18] sm:$0xf]
    %v358 = vld [vmem:[%s5 + $0x1c] sm:$0xf]
    %v359 = vld [vmem:[%s5 + $0x20] sm:$0xf]
    %v360 = vld [vmem:[%s5 + $0x24] sm:$0xf]
    %v361 = vld [vmem:[%s5 + $0x28] sm:$0xf]
    %v362 = vld [vmem:[%s5 + $0x2c] sm:$0xf]
    %v363 = vld [vmem:[%s5 + $0x30] sm:$0xf]
    %v364 = vld [vmem:[%s5 + $0x34] sm:$0xf]
    %v365 = vld [vmem:[%s5 + $0x38] sm:$0xf]
    %v366 = vld [vmem:[%s5 + $0x3c] sm:$0xf]
    %v367 = vld [vmem:[%s5 + $0x40] sm:$0xf]
    %v368 = vld [vmem:[%s5 + $0x44] sm:$0xf]
    %v369 = vld [vmem:[%s5 + $0x48] sm:$0xf]
    %v370 = vld [vmem:[%s5 + $0x4c] sm:$0xf]
    %v371 = vld [vmem:[%s5 + $0x50] sm:$0xf]
    %v372 = vld [vmem:[%s5 + $0x54] sm:$0xf]
    %v373 = vld [vmem:[%s5 + $0x58] sm:$0xf]
    %v374 = vld [vmem:[%s5 + $0x5c] sm:$0xf]
    %v375 = vld [vmem:[%s5 + $0x60] sm:$0xf]
    %v376 = vld [vmem:[%s5 + $0x64] sm:$0xf]
    %v377 = vld [vmem:[%s5 + $0x68] sm:$0xf]
    %v378 = vld [vmem:[%s5 + $0x6c] sm:$0xf]
    %v379 = vld [vmem:[%s5 + $0x70] sm:$0xf]
    %v380 = vld [vmem:[%s5 + $0x74] sm:$0xf]
    %v381 = vld [vmem:[%s5 + $0x78] sm:$0xf]
    %v382 = vld [vmem:[%s5 + $0x7c] sm:$0xf]
    %v383 = vld [vmem:[#allocation4] sm:$0x1]
    %v385 = vlaneseq
    %v386 = vshrl.u32 %v385, 7
    %v387 = vsub.s32 0, %v386
    %v388 = vrot.slane %v383, %v387
    %v422 = vunpack.c.l.b16 %v351
    %v423 = vunpack.c.l.b16 %v352
    %v424 = vunpack.c.l.b16 %v353
    %v425 = vunpack.c.l.b16 %v354
    %v426 = vunpack.c.l.b16 %v355
    %v427 = vunpack.c.l.b16 %v356
    %v428 = vunpack.c.l.b16 %v357
    %v429 = vunpack.c.l.b16 %v358
    %v430 = vunpack.c.l.b16 %v359
    %v431 = vunpack.c.l.b16 %v360
    %v432 = vunpack.c.l.b16 %v361
    %v433 = vunpack.c.l.b16 %v362
    %v434 = vunpack.c.l.b16 %v363
    %v435 = vunpack.c.l.b16 %v364
    %v436 = vunpack.c.l.b16 %v365
    %v437 = vunpack.c.l.b16 %v366
    %v438 = vunpack.c.l.b16 %v367
    %v439 = vunpack.c.l.b16 %v368
    %v440 = vunpack.c.l.b16 %v369
    %v441 = vunpack.c.l.b16 %v370
    %v442 = vunpack.c.l.b16 %v371
    %v443 = vunpack.c.l.b16 %v372
    %v444 = vunpack.c.l.b16 %v373
    %v445 = vunpack.c.l.b16 %v374
    %v446 = vunpack.c.l.b16 %v375
    %v447 = vunpack.c.l.b16 %v376
    %v448 = vunpack.c.l.b16 %v377
    %v449 = vunpack.c.l.b16 %v378
    %v450 = vunpack.c.l.b16 %v379
    %v451 = vunpack.c.l.b16 %v380
    %v452 = vunpack.c.l.b16 %v381
    %v453 = vunpack.c.l.b16 %v382
    %v454 = vpack.c.b16 %v423, %v422
    %v455 = vpack.c.b16 %v425, %v424
    %v456 = vpack.c.b16 %v427, %v426
    %v457 = vpack.c.b16 %v429, %v428
    %v458 = vpack.c.b16 %v431, %v430
    %v459 = vpack.c.b16 %v433, %v432
    %v460 = vpack.c.b16 %v435, %v434
    %v461 = vpack.c.b16 %v437, %v436
    %v462 = vpack.c.b16 %v439, %v438
    %v463 = vpack.c.b16 %v441, %v440
    %v464 = vpack.c.b16 %v443, %v442
    %v465 = vpack.c.b16 %v445, %v444
    %v466 = vpack.c.b16 %v447, %v446
    %v467 = vpack.c.b16 %v449, %v448
    %v468 = vpack.c.b16 %v451, %v450
    %v469 = vpack.c.b16 %v453, %v452
    %486 = vmatprep.subr.bf16.mxu0 0
    %487 = vmatpush1.bf16.msra.mxu0 %v454
    %488 = vmatprep.subr.bf16.mxu0 0
    %489 = vmatpush1.bf16.msra.mxu0 %v455
    %490 = vmatprep.subr.bf16.mxu0 0
    %491 = vmatpush1.bf16.msra.mxu0 %v456
    %492 = vmatprep.subr.bf16.mxu0 0
    %493 = vmatpush1.bf16.msra.mxu0 %v457
    %494 = vmatprep.subr.bf16.mxu0 0
    %495 = vmatpush1.bf16.msra.mxu0 %v458
    %496 = vmatprep.subr.bf16.mxu0 0
    %497 = vmatpush1.bf16.msra.mxu0 %v459
    %498 = vmatprep.subr.bf16.mxu0 0
    %499 = vmatpush1.bf16.msra.mxu0 %v460
    %500 = vmatprep.subr.bf16.mxu0 0
    %501 = vmatpush1.bf16.msra.mxu0 %v461
    %502 = vmatprep.subr.bf16.mxu0 0
    %503 = vmatpush1.bf16.msra.mxu0 %v462
    %504 = vmatprep.subr.bf16.mxu0 0
    %505 = vmatpush1.bf16.msra.mxu0 %v463
    %506 = vmatprep.subr.bf16.mxu0 0
    %507 = vmatpush1.bf16.msra.mxu0 %v464
    %508 = vmatprep.subr.bf16.mxu0 0
    %509 = vmatpush1.bf16.msra.mxu0 %v465
    %510 = vmatprep.subr.bf16.mxu0 0
    %511 = vmatpush1.bf16.msra.mxu0 %v466
    %512 = vmatprep.subr.bf16.mxu0 0
    %513 = vmatpush1.bf16.msra.mxu0 %v467
    %514 = vmatprep.subr.bf16.mxu0 0
    %515 = vmatpush1.bf16.msra.mxu0 %v468
    %516 = vmatprep.subr.bf16.mxu0 0
    %517 = vmatpush1.bf16.msra.mxu0 %v469
    %518 = vmatprep.mubr.bf16.mxu0 %v350
    %519 = vmatmul.mubr.bf16.gmra.mrb[0].mxu0 %v349
    %v520 = vpop.f32.mrb[0].mxu0
    %v521 = vadd.f32 %v388, %v520
    %v522 = vpop.f32.mrb[0].mxu0
    %v523 = vpop.f32.mrb[0].mxu0
    %v524 = vpop.f32.mrb[0].mxu0
    %525 = vdwg.mxu0
    %v526 = vtanh.pop %v521
    %vm527 = vcmask 1024
    %528 = vst.msk [vmem:[%s7] sm:$0x3] %vm527, %v526
    // Predicated region
    $region38: #{tpu_custom_call.1} parent=1 // pred_check
      _
    $region39: #{tpu_custom_call.1} parent=1 // pred_check_branch
      %530 = sbr.rel (0) target = $region41
    $region40: #{tpu_custom_call.1} parent=1 // pred_region
      _
    $region41: #{tpu_custom_call.1} parent=1 // pred_fallthru
      _
    // Predicated region
    $region42: #{tpu_custom_call.1} parent=1 // pred_check
      _
    $region43: #{tpu_custom_call.1} parent=1 // pred_check_branch
      %532 = sbr.rel (0) target = $region45
    $region44: #{tpu_custom_call.1} parent=1 // pred_region
      _
    $region45: #{tpu_custom_call.1} parent=1 // pred_fallthru
      _
    %533 = vsyncpa [#allocation6], 1
    %534 = vsyncpa [#allocation8], 1

</llo_original>
